<compile_context>
chip_gen: v6e
topology: v6e:2x2x1
jax: 0.10.0
libtpu: 0.0.40
codegen_flags: <defaults>
</compile_context>

<pallas_src>
import functools

import jax
import jax.numpy as jnp
from jax.experimental import pallas as pl
from jax.experimental.pallas import tpu as pltpu


def _round_up(x, m):
    return ((x + m - 1) // m) * m


def _cdiv(a, b):
    return (a + b - 1) // b


def _device_kind():
    try:
        return jax.devices()[0].device_kind.lower()
    except Exception:
        return ""


def _vmem_capacity_bytes():
    try:
        return int(pltpu.get_tpu_info().vmem_capacity_bytes)
    except Exception:
        return 64 * 1024 * 1024  # v7x per-TC VMEM: safe lower bound


def prepare_ff_params(w1, b1, w2, b2, gamma, beta):
    """One-time (init-time) parameter prep — call once, reuse every forward.

    * Weights are cast to bf16 here, not per call (avoids a convert + extra HBM
      traffic on every forward under jit).
    * dff is zero-padded to a multiple of 128 so every dff chunk is lane-aligned
      and padded hidden units contribute exactly 0 (ReLU(0 + 0) = 0, W2 rows 0).
    * Biases / LN params become 2-D (1, F) lane-major f32 blocks.
    """
    d_model, dff = w1.shape
    dff_p = _round_up(dff, 128)
    if dff_p != dff:
        w1 = jnp.pad(w1, ((0, 0), (0, dff_p - dff)))
        b1 = jnp.pad(b1, ((0, dff_p - dff),))
        w2 = jnp.pad(w2, ((0, dff_p - dff), (0, 0)))
    return dict(
        w1=w1.astype(jnp.bfloat16),
        b1=b1.reshape(1, dff_p).astype(jnp.float32),
        w2=w2.astype(jnp.bfloat16),
        b2=b2.reshape(1, d_model).astype(jnp.float32),
        gamma=gamma.reshape(1, d_model).astype(jnp.float32),
        beta=beta.reshape(1, d_model).astype(jnp.float32),
    )


def _ff_kernel(x_ref, w1_ref, b1_ref, w2_ref, b2_ref, g_ref, be_ref,
               o_ref, acc_ref, *, bf16_epilogue):
    k = pl.program_id(1)
    nk = pl.num_programs(1)

    @pl.when(k == 0)
    def _():
        acc_ref[...] = jnp.zeros_like(acc_ref)

    # fc1 on this dff chunk: bf16 MXU, f32 accumulation.
    x_bf16 = x_ref[...].astype(jnp.bfloat16)
    h = jnp.dot(x_bf16, w1_ref[...], preferred_element_type=jnp.float32)

    if bf16_epilogue:
        # v6e / v7x: bf16 VPU -> bias + ReLU on the (tm, tk) intermediate in bf16
        # (halves VALU work and VMEM ld/st bytes on the largest elementwise tile).
        h16 = jnp.maximum(h.astype(jnp.bfloat16) + b1_ref[...].astype(jnp.bfloat16), 0.0)
    else:
        # v5e and older: no bf16 VPU -> keep the elementwise path in f32.
        h16 = jnp.maximum(h + b1_ref[...], 0.0).astype(jnp.bfloat16)

    # fc2 partial product for this dff chunk, accumulated in f32.
    acc_ref[...] += jnp.dot(h16, w2_ref[...], preferred_element_type=jnp.float32)

    # Epilogue (bias + residual + LayerNorm) only once per row tile.
    # TODO(synk): if profiling shows the MXU draining here, split tm into two
    # sub-chunks with an unrolled fori_loop so matmul(j+1) overlaps LN(j).
    @pl.when(k == nk - 1)
    def _():
        z = acc_ref[...] + b2_ref[...] + x_ref[...].astype(jnp.float32)
        mean = jnp.mean(z, axis=-1, keepdims=True)
        c = z - mean                                   # two-pass stats: no cancellation
        var = jnp.mean(c * c, axis=-1, keepdims=True)
        zn = c * jax.lax.rsqrt(var + 1e-5)
        o_ref[...] = (zn * g_ref[...] + be_ref[...]).astype(o_ref.dtype)


def _plan_tiles(M, d_model, dff, in_itemsize, out_itemsize, tm_pref):
    """Choose (tm, tk, n_k, vmem_limit_bytes) for the current chip's VMEM."""
    cap = _vmem_capacity_bytes()
    budget = max(cap - 8 * 1024 * 1024, cap // 2)      # headroom (≈56 MiB on v7x)

    tm = min(tm_pref, _round_up(M, 8))
    # Short sequences: give a 2-TC part (v7x megacore) at least 2 row tiles.
    while _cdiv(M, tm) < 2 and tm > 8:
        tm = _round_up(tm // 2, 8)

    def footprint(tk, n_k):
        wbuf = 1 if n_k == 1 else 2                    # Buffered(1) when resident
        return (2 * tm * d_model * in_itemsize         # x tile (double-buffered)
                + 2 * tm * d_model * out_itemsize      # out tile (double-buffered)
                + wbuf * 2 * d_model * tk * 2          # W1 + W2 blocks (bf16)
                + wbuf * tk * 4                        # b1 block
                + 3 * d_model * 4                      # b2 / gamma / beta
                + tm * d_model * 4                     # f32 accumulator scratch
                + tm * tk * 8                          # fc1 intermediate (f32 + bf16)
                + 4 * tm * d_model * 4)                # residual / LN temporaries

    if footprint(dff, 1) <= budget:
        tk, n_k = dff, 1                               # weights fully resident, DMA'd once
    else:
        # Stream dff: largest 128-multiple chunk that fits double-buffered and
        # divides the (128-padded) dff, so the reduction has no ragged chunk.
        per_tk = 8 * d_model + 8 + 8 * tm
        tk_cap = max(128, (budget - footprint(0, 2)) // per_tk)
        q = dff // 128
        tk = 128
        for d in range(q, 0, -1):
            if q % d == 0 and 128 * d <= tk_cap:
                tk = 128 * d
                break
        n_k = dff // tk

    # If even the smallest chunk does not fit, shrink the row tile.
    while footprint(tk, n_k) > budget and tm > 8:
        tm = _round_up(tm // 2, 8)

    vmem_limit = int(min(budget, max(2 * footprint(tk, n_k), 32 * 1024 * 1024)))
    return tm, tk, n_k, vmem_limit


def feed_forward(x, params, *, tm=None):
    """Fused LayerNorm(fc2(ReLU(fc1(x))) + x). x: (B, S, d_model); params from
    prepare_ff_params()."""
    B, S, d_model = x.shape
    dff = params["w1"].shape[1]                        # 128-padded dff
    M = B * S

    kind = _device_kind()
    bf16_epilogue = not any(v in kind for v in ("v2", "v3", "v4", "v5"))
    if tm is None:
        tm = 512 if "v6" in kind else 256              # v6e: 128 MiB VMEM headroom

    tm, tk, n_k, vmem_limit = _plan_tiles(
        M, d_model, dff, x.dtype.itemsize, x.dtype.itemsize, tm)
    row_tiles = _cdiv(M, tm)

    # No activation padding: the ragged last row tile is handled by Pallas
    # (all math is row-wise independent; out-of-bounds output rows are dropped).
    x2d = x.reshape(M, d_model)

    single = dict(pipeline_mode=pl.Buffered(1))        # resident operands: 1 buffer
    wt = single if n_k == 1 else {}                    # streamed dff: keep 2 buffers

    grid_spec = pltpu.PrefetchScalarGridSpec(
        num_scalar_prefetch=0,
        grid=(row_tiles, n_k),
        in_specs=[
            pl.BlockSpec((tm, d_model), lambda i, k: (i, 0)),             # x rows
            pl.BlockSpec((d_model, tk), lambda i, k: (0, k), **wt),       # W1 chunk
            pl.BlockSpec((1, tk), lambda i, k: (0, k), **wt),             # b1 chunk
            pl.BlockSpec((tk, d_model), lambda i, k: (k, 0), **wt),       # W2 chunk
            pl.BlockSpec((1, d_model), lambda i, k: (0, 0), **single),    # b2
            pl.BlockSpec((1, d_model), lambda i, k: (0, 0), **single),    # gamma
            pl.BlockSpec((1, d_model), lambda i, k: (0, 0), **single),    # beta
        ],
        out_specs=pl.BlockSpec((tm, d_model), lambda i, k: (i, 0)),
        scratch_shapes=[pltpu.VMEM((tm, d_model), jnp.float32)],
    )

    weight_passes = 1 if n_k == 1 else row_tiles
    cost = pl.CostEstimate(
        flops=4 * M * d_model * dff + 10 * M * d_model + 2 * M * dff,
        transcendentals=M,
        bytes_accessed=(2 * M * d_model * x.dtype.itemsize
                        + weight_passes * (2 * d_model * dff * 2 + dff * 4)
                        + 3 * d_model * 4),
    )

    out2d = pl.pallas_call(
        functools.partial(_ff_kernel, bf16_epilogue=bf16_epilogue),
        out_shape=jax.ShapeDtypeStruct((M, d_model), x.dtype),
        grid_spec=grid_spec,
        compiler_params=pltpu.CompilerParams(
            dimension_semantics=("parallel", "arbitrary"),
            vmem_limit_bytes=vmem_limit),
        cost_estimate=cost,
    )(x2d, params["w1"], params["b1"], params["w2"], params["b2"],
      params["gamma"], params["beta"])

    return out2d.reshape(B, S, d_model)


def _reference(x, w1, b1, w2, b2, gamma, beta):
    # Pure-JAX f32 reference of the PyTorch forward.
    h = jnp.maximum(x @ w1 + b1, 0.0)
    y = h @ w2 + b2
    z = y + x
    mean = jnp.mean(z, axis=-1, keepdims=True)
    var = jnp.mean((z - mean) ** 2, axis=-1, keepdims=True)
    return (z - mean) / jnp.sqrt(var + 1e-5) * gamma + beta


if __name__ == "__main__":
    # Small shapes consistent with the module: batch=2, seq=8, d_model=32, dff=64
    B, S, d_model, dff = 2, 8, 32, 64

    key = jax.random.PRNGKey(0)
    kx, kw1, kb1, kw2, kb2 = jax.random.split(key, 5)

    x = jax.random.normal(kx, (B, S, d_model), dtype=jnp.float32)

    # PyTorch Linear stores W as (out, in); we keep the transposed (in, out)
    # layout so the kernel computes x @ W directly.
    w1 = jax.random.normal(kw1, (d_model, dff), dtype=jnp.float32) * 0.05
    b1 = jax.random.normal(kb1, (dff,), dtype=jnp.float32) * 0.05
    w2 = jax.random.normal(kw2, (dff, d_model), dtype=jnp.float32) * 0.05
    b2 = jax.random.normal(kb2, (d_model,), dtype=jnp.float32) * 0.05
    gamma = jnp.ones((d_model,), dtype=jnp.float32)   # LayerNorm default init
    beta = jnp.zeros((d_model,), dtype=jnp.float32)

    params = prepare_ff_params(w1, b1, w2, b2, gamma, beta)   # one-time init cast/pad
    out = jax.block_until_ready(feed_forward(x, params))

    ref = _reference(x, w1, b1, w2, b2, gamma, beta)
    assert out.shape == (B, S, d_model)
    # bf16 MXU matmuls (f32 accumulation) -> compare at bf16-level tolerance.
    assert jnp.allclose(out, ref, atol=2e-2, rtol=2e-2), "mismatch vs reference"

    print("KERNEL_OK")
</pallas_src>

<mosaic_0001>
module attributes {stable_mosaic.version = 11 : i64} {
  func.func @_ff_kernel(%arg0: i32, %arg1: i32, %arg2: memref<8x32xf32, #tpu.memory_space<vmem>>, %arg3: memref<32x128xbf16, #tpu.memory_space<vmem>>, %arg4: memref<1x128xf32, #tpu.memory_space<vmem>>, %arg5: memref<128x32xbf16, #tpu.memory_space<vmem>>, %arg6: memref<1x32xf32, #tpu.memory_space<vmem>>, %arg7: memref<1x32xf32, #tpu.memory_space<vmem>>, %arg8: memref<1x32xf32, #tpu.memory_space<vmem>>, %arg9: memref<8x32xf32, #tpu.memory_space<vmem>>, %arg10: memref<8x32xf32, #tpu.memory_space<vmem>>) attributes {dimension_semantics = [#tpu.dimension_semantics<parallel>, #tpu.dimension_semantics<arbitrary>], iteration_bounds = array<i64: 2, 1>, scalar_prefetch = 0 : i64, scratch_operands = 1 : i64, tpu.core_type = #tpu.core_type<tc>, window_params = [{transform_indices = @transform_0, window_bounds = array<i64: 8, 32>}, {pipeline_mode = #tpu.pipeline_mode<synchronous>, transform_indices = @transform_1, window_bounds = array<i64: 32, 128>}, {pipeline_mode = #tpu.pipeline_mode<synchronous>, transform_indices = @transform_2, window_bounds = array<i64: 1, 128>}, {pipeline_mode = #tpu.pipeline_mode<synchronous>, transform_indices = @transform_3, window_bounds = array<i64: 128, 32>}, {pipeline_mode = #tpu.pipeline_mode<synchronous>, transform_indices = @transform_4, window_bounds = array<i64: 1, 32>}, {pipeline_mode = #tpu.pipeline_mode<synchronous>, transform_indices = @transform_5, window_bounds = array<i64: 1, 32>}, {pipeline_mode = #tpu.pipeline_mode<synchronous>, transform_indices = @transform_6, window_bounds = array<i64: 1, 32>}, {transform_indices = @transform_7, window_bounds = array<i64: 8, 32>}]} {
    %c0_i32 = arith.constant 0 : i32
    %0 = arith.cmpi eq, %arg1, %c0_i32 : i32
    %1 = arith.extui %0 : i1 to i32
    %c0_i32_0 = arith.constant 0 : i32
    %2 = arith.cmpi ne, %1, %c0_i32_0 : i32
    scf.if %2 {
      %cst_16 = arith.constant 0.000000e+00 : f32
      %22 = vector.broadcast %cst_16 : f32 to vector<8x32xf32>
      %c0_17 = arith.constant 0 : index
      %c0_18 = arith.constant 0 : index
      %23 = vector.load %arg10[%c0_17, %c0_18] : memref<8x32xf32, #tpu.memory_space<vmem>>, vector<8x32xf32>
      tpu.vector_store %arg10[%c0_17, %c0_18], %22 {strides = array<i32>} : memref<8x32xf32, #tpu.memory_space<vmem>>, vector<8x32xf32>,
    } else {
    }
    %c0 = arith.constant 0 : index
    %c0_1 = arith.constant 0 : index
    %3 = vector.load %arg2[%c0, %c0_1] : memref<8x32xf32, #tpu.memory_space<vmem>>, vector<8x32xf32>
    %4 = arith.truncf %3 : vector<8x32xf32> to vector<8x32xbf16>
    %c0_2 = arith.constant 0 : index
    %c0_3 = arith.constant 0 : index
    %5 = vector.load %arg3[%c0_2, %c0_3] : memref<32x128xbf16, #tpu.memory_space<vmem>>, vector<32x128xbf16>
    %cst = arith.constant dense<0.000000e+00> : vector<8x128xf32>
    %6 = tpu.matmul %4, %5, %cst {dimension_numbers = #tpu.dot_dimension_numbers<[1], [0], [0], [1], [0, 0, 1, 1], [], []>} : vector<8x32xbf16>, vector<32x128xbf16>, vector<8x128xf32> -> vector<8x128xf32>
    %7 = arith.truncf %6 : vector<8x128xf32> to vector<8x128xbf16>
    %c0_4 = arith.constant 0 : index
    %c0_5 = arith.constant 0 : index
    %8 = vector.load %arg4[%c0_4, %c0_5] : memref<1x128xf32, #tpu.memory_space<vmem>>, vector<1x128xf32>
    %9 = arith.truncf %8 : vector<1x128xf32> to vector<1x128xbf16>
    %10 = vector.broadcast %9 : vector<1x128xbf16> to vector<8x128xbf16>
    %11 = arith.addf %7, %10 : vector<8x128xbf16>
    %cst_6 = arith.constant 0.000000e+00 : bf16
    %12 = vector.broadcast %cst_6 : bf16 to vector<8x128xbf16>
    %13 = arith.maximumf %11, %12 : vector<8x128xbf16>
    %c0_7 = arith.constant 0 : index
    %c0_8 = arith.constant 0 : index
    %14 = vector.load %arg10[%c0_7, %c0_8] : memref<8x32xf32, #tpu.memory_space<vmem>>, vector<8x32xf32>
    %c0_9 = arith.constant 0 : index
    %c0_10 = arith.constant 0 : index
    %15 = vector.load %arg5[%c0_9, %c0_10] : memref<128x32xbf16, #tpu.memory_space<vmem>>, vector<128x32xbf16>
    %cst_11 = arith.constant dense<0.000000e+00> : vector<8x32xf32>
    %16 = tpu.matmul %13, %15, %cst_11 {dimension_numbers = #tpu.dot_dimension_numbers<[1], [0], [0], [1], [0, 0, 1, 1], [], []>} : vector<8x128xbf16>, vector<128x32xbf16>, vector<8x32xf32> -> vector<8x32xf32>
    %17 = arith.addf %14, %16 : vector<8x32xf32>
    %c0_12 = arith.constant 0 : index
    %c0_13 = arith.constant 0 : index
    %18 = vector.load %arg10[%c0_12, %c0_13] : memref<8x32xf32, #tpu.memory_space<vmem>>, vector<8x32xf32>
    tpu.vector_store %arg10[%c0_12, %c0_13], %17 {strides = array<i32>} : memref<8x32xf32, #tpu.memory_space<vmem>>, vector<8x32xf32>,
    %c0_i32_14 = arith.constant 0 : i32
    %19 = arith.cmpi eq, %arg1, %c0_i32_14 : i32
    %20 = arith.extui %19 : i1 to i32
    %c0_i32_15 = arith.constant 0 : i32
    %21 = arith.cmpi ne, %20, %c0_i32_15 : i32
    scf.if %21 {
      %c0_16 = arith.constant 0 : index
      %c0_17 = arith.constant 0 : index
      %22 = vector.load %arg10[%c0_16, %c0_17] : memref<8x32xf32, #tpu.memory_space<vmem>>, vector<8x32xf32>
      %c0_18 = arith.constant 0 : index
      %c0_19 = arith.constant 0 : index
      %23 = vector.load %arg6[%c0_18, %c0_19] : memref<1x32xf32, #tpu.memory_space<vmem>>, vector<1x32xf32>
      %24 = vector.broadcast %23 : vector<1x32xf32> to vector<8x32xf32>
      %25 = arith.addf %22, %24 : vector<8x32xf32>
      %c0_20 = arith.constant 0 : index
      %c0_21 = arith.constant 0 : index
      %26 = vector.load %arg2[%c0_20, %c0_21] : memref<8x32xf32, #tpu.memory_space<vmem>>, vector<8x32xf32>
      %27 = arith.addf %25, %26 : vector<8x32xf32>
      %cst_22 = arith.constant dense<0.000000e+00> : vector<8xf32>
      %28 = vector.multi_reduction <add>, %27, %cst_22 [1] : vector<8x32xf32> to vector<8xf32>
      %29 = vector.shape_cast %28 : vector<8xf32> to vector<8x1xf32>
      %cst_23 = arith.constant 3.200000e+01 : f32
      %30 = vector.broadcast %cst_23 : f32 to vector<8x1xf32>
      %31 = arith.divf %29, %30 : vector<8x1xf32>
      %32 = vector.broadcast %31 : vector<8x1xf32> to vector<8x32xf32>
      %33 = arith.subf %27, %32 : vector<8x32xf32>
      %34 = arith.mulf %33, %33 : vector<8x32xf32>
      %cst_24 = arith.constant dense<0.000000e+00> : vector<8xf32>
      %35 = vector.multi_reduction <add>, %34, %cst_24 [1] : vector<8x32xf32> to vector<8xf32>
      %36 = vector.shape_cast %35 : vector<8xf32> to vector<8x1xf32>
      %cst_25 = arith.constant 3.200000e+01 : f32
      %37 = vector.broadcast %cst_25 : f32 to vector<8x1xf32>
      %38 = arith.divf %36, %37 : vector<8x1xf32>
      %cst_26 = arith.constant 9.99999974E-6 : f32
      %39 = vector.broadcast %cst_26 : f32 to vector<8x1xf32>
      %40 = arith.addf %38, %39 : vector<8x1xf32>
      %41 = math.rsqrt %40 : vector<8x1xf32>
      %42 = vector.broadcast %41 : vector<8x1xf32> to vector<8x32xf32>
      %43 = arith.mulf %33, %42 : vector<8x32xf32>
      %c0_27 = arith.constant 0 : index
      %c0_28 = arith.constant 0 : index
      %44 = vector.load %arg7[%c0_27, %c0_28] : memref<1x32xf32, #tpu.memory_space<vmem>>, vector<1x32xf32>
      %45 = vector.broadcast %44 : vector<1x32xf32> to vector<8x32xf32>
      %46 = arith.mulf %43, %45 : vector<8x32xf32>
      %c0_29 = arith.constant 0 : index
      %c0_30 = arith.constant 0 : index
      %47 = vector.load %arg8[%c0_29, %c0_30] : memref<1x32xf32, #tpu.memory_space<vmem>>, vector<1x32xf32>
      %48 = vector.broadcast %47 : vector<1x32xf32> to vector<8x32xf32>
      %49 = arith.addf %46, %48 : vector<8x32xf32>
      %c0_31 = arith.constant 0 : index
      %c0_32 = arith.constant 0 : index
      %50 = vector.load %arg9[%c0_31, %c0_32] : memref<8x32xf32, #tpu.memory_space<vmem>>, vector<8x32xf32>
      tpu.vector_store %arg9[%c0_31, %c0_32], %49 {strides = array<i32>} : memref<8x32xf32, #tpu.memory_space<vmem>>, vector<8x32xf32>,
    } else {
    }
    return
  }
  func.func @transform_0(%arg0: i32, %arg1: i32) -> (i32, i32) {
    %c0_i32 = arith.constant 0 : i32
    %c0_i32_0 = arith.constant 0 : i32
    return %arg0, %c0_i32 : i32, i32
  }
  func.func @transform_1(%arg0: i32, %arg1: i32) -> (i32, i32) {
    %c0_i32 = arith.constant 0 : i32
    %c0_i32_0 = arith.constant 0 : i32
    return %c0_i32, %arg1 : i32, i32
  }
  func.func @transform_2(%arg0: i32, %arg1: i32) -> (i32, i32) {
    %c0_i32 = arith.constant 0 : i32
    %c0_i32_0 = arith.constant 0 : i32
    return %c0_i32, %arg1 : i32, i32
  }
  func.func @transform_3(%arg0: i32, %arg1: i32) -> (i32, i32) {
    %c0_i32 = arith.constant 0 : i32
    %c0_i32_0 = arith.constant 0 : i32
    return %arg1, %c0_i32 : i32, i32
  }
  func.func @transform_4(%arg0: i32, %arg1: i32) -> (i32, i32) {
    %c0_i32 = arith.constant 0 : i32
    %c0_i32_0 = arith.constant 0 : i32
    %c0_i32_1 = arith.constant 0 : i32
    return %c0_i32, %c0_i32_0 : i32, i32
  }
  func.func @transform_5(%arg0: i32, %arg1: i32) -> (i32, i32) {
    %c0_i32 = arith.constant 0 : i32
    %c0_i32_0 = arith.constant 0 : i32
    %c0_i32_1 = arith.constant 0 : i32
    return %c0_i32, %c0_i32_0 : i32, i32
  }
  func.func @transform_6(%arg0: i32, %arg1: i32) -> (i32, i32) {
    %c0_i32 = arith.constant 0 : i32
    %c0_i32_0 = arith.constant 0 : i32
    %c0_i32_1 = arith.constant 0 : i32
    return %c0_i32, %c0_i32_0 : i32, i32
  }
  func.func @transform_7(%arg0: i32, %arg1: i32) -> (i32, i32) {
    %c0_i32 = arith.constant 0 : i32
    %c0_i32_0 = arith.constant 0 : i32
    return %arg0, %c0_i32 : i32, i32
  }
}

</mosaic_0001>

<llo_original>
// kernel: tpu_custom_call.1
$region0: #{tpu_custom_call.1}
  #allocation0 [shape = 'u32[]', space=smem, size = 0x4, offset = 0x4, fixed_abs, tag = 'smem constant byte address 0x4 - core index']
  #allocation1 [shape = 'u32[144,128]{1,0:T(1,128)}', space=vmem, size = 0x12000, scoped, tag = 'internal scratch']
  #allocation2 [shape = 'f32[8,32]{1,0:T(8,128)}', space=vmem, size = 0x1000, scoped, tag = 'scratch operand']
  %s0 = inlined_call_operand.vmem [shape: f32[16,32], index: 0, kind: input, shape index: {}]
  %s1 = inlined_call_operand.vmem [shape: bf16[32,128], index: 1, kind: input, shape index: {}]
  %s2 = inlined_call_operand.vmem [shape: f32[1,128], index: 2, kind: input, shape index: {}]
  %s3 = inlined_call_operand.vmem [shape: bf16[128,32], index: 3, kind: input, shape index: {}]
  %s4 = inlined_call_operand.vmem [shape: f32[1,32], index: 4, kind: input, shape index: {}]
  %s5 = inlined_call_operand.vmem [shape: f32[1,32], index: 5, kind: input, shape index: {}]
  %s6 = inlined_call_operand.vmem [shape: f32[1,32], index: 6, kind: input, shape index: {}]
  %s7 = inlined_call_operand.hbm [shape: f32[16,32], index: 7, kind: output, shape index: {}]
  %s8 = sld [smem:[#allocation0]]
  $region69: #{tpu_custom_call.1} parent=0
    _
  %s10 = ssub.s32 1, %s8
  %s11 = scalar_select 0, %s10, %s8
  $region1: #{tpu_custom_call.1} parent=0
    #allocation3 [shape = 'u8[8192]{0}', space=vmem, size = 0x2000, scoped, tag = 'output window, operand 0']
    #allocation4 [shape = 's32[2]{0}', space=sflag, size = 0x8, scoped, tag = 'scoped memory for tpu_custom_call.1']
    %12 = vsyncpa [#allocation4], 0
    %s13 = scalar_lea.sflag [#allocation4], 1
    %14 = vsyncpa %s13, 0
    loop: start=0, step=1, limit=4
    $region2: #{tpu_custom_call.1} parent=1 // loop_pre_header
      _
    $region3: #{tpu_custom_call.1} parent=1 // loop_header
      %s16 = sphi 0, %s20
      %p17 = scmp.ge.s32.totalorder %s16, 4
      %s23 = sphi 0, %s35
      %s24 = sphi 0, %s31
      %s25 = sphi 0, %s23
      %s26 = sphi 0, %s24
      %s27 = sphi 0, %s25
      %s28 = sphi 0, %s26
      %s38 = sphi 0, %s40
      %s41 = sphi 0, %s38
      %s42 = sphi 0, %s41
      %s58 = sphi 0, %s42
      %s64 = sphi 0, %s66
      %s67 = sphi 0, %s64
      %s68 = sphi 0, %s67
      %s84 = sphi 0, %s68
      %s90 = sphi 0, %s92
      %s93 = sphi 0, %s90
      %s94 = sphi 0, %s93
      %s110 = sphi 0, %s94
      %s116 = sphi 0, %s118
      %s119 = sphi 0, %s116
      %s120 = sphi 0, %s119
      %s136 = sphi 0, %s120
      %s140 = sphi 0, %s140
      %s142 = sphi 0, %s140
      %s143 = sphi 0, %s142
      %s157 = sphi 0, %s143
      %s161 = sphi 0, %s161
      %s163 = sphi 0, %s161
      %s164 = sphi 0, %s163
      %s178 = sphi 0, %s164
      %s182 = sphi 0, %s182
      %s184 = sphi 0, %s182
      %s185 = sphi 0, %s184
      %s199 = sphi 0, %s185
      %s205 = sphi 0, %s207
      %s208 = sphi 0, %s205
      %s209 = sphi 0, %s208
      %s225 = sphi 0, %s209
    $region4: #{tpu_custom_call.1} parent=1 // loop_header_branch
      %19 = sbr.rel (%p17) target = $region8
    $region5: #{tpu_custom_call.1} parent=1 // loop_body
      %s21 = ssub.s32 %s16, 1
      %s22 = ssub.s32 %s16, 2
      %s29 = sadd.s32 1, %s24
      %p30 = scmp.ge.s32.totalorder %s29, 1
      %s31 = scalar_select %p30, 0, %s29
      %s32 = sadd.s32 1, %s23
      %s33 = scalar_select %p30, %s32, %s23
      %p34 = scmp.ge.s32.totalorder %s33, 2
      %s35 = scalar_select %p34, 0, %s33
      %s36 = ssub.s32 %s23, %s35
      %p37 = scmp.eq.s32.totalorder %s36, 0
      %s39 = sadd.s32 %s38, 1
      %s40 = scalar_select %p37, %s38, %s39
      %p43 = pneg %p37
      %p44 = scmp.eq.s32.totalorder %s16, 1
      %p45 = por %p43, %p44
      %p46 = scmp.ne.s32.totalorder %s38, %s41
      %p47 = scmp.eq.s32.totalorder %s16, 0
      %p48 = por %p46, %p47
      %p49 = scmp.ne.s32.totalorder %s38, %s41
      %p50 = scmp.eq.s32.totalorder %s21, 1
      %p51 = por %p49, %p50
      %p52 = scmp.ne.s32.totalorder %s41, %s42
      %p53 = scmp.eq.s32.totalorder %s21, 0
      %p54 = por %p52, %p53
      %p55 = scmp.ne.s32.totalorder %s41, %s42
      %p56 = scmp.eq.s32.totalorder %s22, 1
      %p57 = por %p55, %p56
      %p59 = scmp.ne.s32.totalorder %s42, %s58
      %p60 = scmp.eq.s32.totalorder %s22, 0
      %p61 = por %p59, %p60
      %s62 = ssub.s32 %s24, %s31
      %p63 = scmp.eq.s32.totalorder %s62, 0
      %s65 = sadd.s32 %s64, 1
      %s66 = scalar_select %p63, %s64, %s65
      %p69 = pneg %p63
      %p70 = scmp.eq.s32.totalorder %s16, 1
      %p71 = por %p69, %p70
      %p72 = scmp.ne.s32.totalorder %s64, %s67
      %p73 = scmp.eq.s32.totalorder %s16, 0
      %p74 = por %p72, %p73
      %p75 = scmp.ne.s32.totalorder %s64, %s67
      %p76 = scmp.eq.s32.totalorder %s21, 1
      %p77 = por %p75, %p76
      %p78 = scmp.ne.s32.totalorder %s67, %s68
      %p79 = scmp.eq.s32.totalorder %s21, 0
      %p80 = por %p78, %p79
      %p81 = scmp.ne.s32.totalorder %s67, %s68
      %p82 = scmp.eq.s32.totalorder %s22, 1
      %p83 = por %p81, %p82
      %p85 = scmp.ne.s32.totalorder %s68, %s84
      %p86 = scmp.eq.s32.totalorder %s22, 0
      %p87 = por %p85, %p86
      %s88 = ssub.s32 %s24, %s31
      %p89 = scmp.eq.s32.totalorder %s88, 0
      %s91 = sadd.s32 %s90, 1
      %s92 = scalar_select %p89, %s90, %s91
      %p95 = pneg %p89
      %p96 = scmp.eq.s32.totalorder %s16, 1
      %p97 = por %p95, %p96
      %p98 = scmp.ne.s32.totalorder %s90, %s93
      %p99 = scmp.eq.s32.totalorder %s16, 0
      %p100 = por %p98, %p99
      %p101 = scmp.ne.s32.totalorder %s90, %s93
      %p102 = scmp.eq.s32.totalorder %s21, 1
      %p103 = por %p101, %p102
      %p104 = scmp.ne.s32.totalorder %s93, %s94
      %p105 = scmp.eq.s32.totalorder %s21, 0
      %p106 = por %p104, %p105
      %p107 = scmp.ne.s32.totalorder %s93, %s94
      %p108 = scmp.eq.s32.totalorder %s22, 1
      %p109 = por %p107, %p108
      %p111 = scmp.ne.s32.totalorder %s94, %s110
      %p112 = scmp.eq.s32.totalorder %s22, 0
      %p113 = por %p111, %p112
      %s114 = ssub.s32 %s24, %s31
      %p115 = scmp.eq.s32.totalorder %s114, 0
      %s117 = sadd.s32 %s116, 1
      %s118 = scalar_select %p115, %s116, %s117
      %p121 = pneg %p115
      %p122 = scmp.eq.s32.totalorder %s16, 1
      %p123 = por %p121, %p122
      %p124 = scmp.ne.s32.totalorder %s116, %s119
      %p125 = scmp.eq.s32.totalorder %s16, 0
      %p126 = por %p124, %p125
      %p127 = scmp.ne.s32.totalorder %s116, %s119
      %p128 = scmp.eq.s32.totalorder %s21, 1
      %p129 = por %p127, %p128
      %p130 = scmp.ne.s32.totalorder %s119, %s120
      %p131 = scmp.eq.s32.totalorder %s21, 0
      %p132 = por %p130, %p131
      %p133 = scmp.ne.s32.totalorder %s119, %s120
      %p134 = scmp.eq.s32.totalorder %s22, 1
      %p135 = por %p133, %p134
      %p137 = scmp.ne.s32.totalorder %s120, %s136
      %p138 = scmp.eq.s32.totalorder %s22, 0
      %p139 = por %p137, %p138
      %s141 = sadd.s32 %s140, 1
      %p144 = scmp.eq.s32.totalorder %s16, 1
      %p145 = scmp.ne.s32.totalorder %s140, %s142
      %p146 = scmp.eq.s32.totalorder %s16, 0
      %p147 = por %p145, %p146
      %p148 = scmp.ne.s32.totalorder %s140, %s142
      %p149 = scmp.eq.s32.totalorder %s21, 1
      %p150 = por %p148, %p149
      %p151 = scmp.ne.s32.totalorder %s142, %s143
      %p152 = scmp.eq.s32.totalorder %s21, 0
      %p153 = por %p151, %p152
      %p154 = scmp.ne.s32.totalorder %s142, %s143
      %p155 = scmp.eq.s32.totalorder %s22, 1
      %p156 = por %p154, %p155
      %p158 = scmp.ne.s32.totalorder %s143, %s157
      %p159 = scmp.eq.s32.totalorder %s22, 0
      %p160 = por %p158, %p159
      %s162 = sadd.s32 %s161, 1
      %p165 = scmp.eq.s32.totalorder %s16, 1
      %p166 = scmp.ne.s32.totalorder %s161, %s163
      %p167 = scmp.eq.s32.totalorder %s16, 0
      %p168 = por %p166, %p167
      %p169 = scmp.ne.s32.totalorder %s161, %s163
      %p170 = scmp.eq.s32.totalorder %s21, 1
      %p171 = por %p169, %p170
      %p172 = scmp.ne.s32.totalorder %s163, %s164
      %p173 = scmp.eq.s32.totalorder %s21, 0
      %p174 = por %p172, %p173
      %p175 = scmp.ne.s32.totalorder %s163, %s164
      %p176 = scmp.eq.s32.totalorder %s22, 1
      %p177 = por %p175, %p176
      %p179 = scmp.ne.s32.totalorder %s164, %s178
      %p180 = scmp.eq.s32.totalorder %s22, 0
      %p181 = por %p179, %p180
      %s183 = sadd.s32 %s182, 1
      %p186 = scmp.eq.s32.totalorder %s16, 1
      %p187 = scmp.ne.s32.totalorder %s182, %s184
      %p188 = scmp.eq.s32.totalorder %s16, 0
      %p189 = por %p187, %p188
      %p190 = scmp.ne.s32.totalorder %s182, %s184
      %p191 = scmp.eq.s32.totalorder %s21, 1
      %p192 = por %p190, %p191
      %p193 = scmp.ne.s32.totalorder %s184, %s185
      %p194 = scmp.eq.s32.totalorder %s21, 0
      %p195 = por %p193, %p194
      %p196 = scmp.ne.s32.totalorder %s184, %s185
      %p197 = scmp.eq.s32.totalorder %s22, 1
      %p198 = por %p196, %p197
      %p200 = scmp.ne.s32.totalorder %s185, %s199
      %p201 = scmp.eq.s32.totalorder %s22, 0
      %p202 = por %p200, %p201
      %s203 = ssub.s32 %s23, %s35
      %p204 = scmp.eq.s32.totalorder %s203, 0
      %s206 = sadd.s32 %s205, 1
      %s207 = scalar_select %p204, %s205, %s206
      %p210 = pneg %p204
      %p211 = scmp.eq.s32.totalorder %s16, 1
      %p212 = por %p210, %p211
      %p213 = scmp.ne.s32.totalorder %s205, %s208
      %p214 = scmp.eq.s32.totalorder %s16, 0
      %p215 = por %p213, %p214
      %p216 = scmp.ne.s32.totalorder %s205, %s208
      %p217 = scmp.eq.s32.totalorder %s21, 1
      %p218 = por %p216, %p217
      %p219 = scmp.ne.s32.totalorder %s208, %s209
      %p220 = scmp.eq.s32.totalorder %s21, 0
      %p221 = por %p219, %p220
      %p222 = scmp.ne.s32.totalorder %s208, %s209
      %p223 = scmp.eq.s32.totalorder %s22, 1
      %p224 = por %p222, %p223
      %p226 = scmp.ne.s32.totalorder %s209, %s225
      %p227 = scmp.eq.s32.totalorder %s22, 0
      %p228 = por %p226, %p227
      %p229 = scmp.le.s32.totalorder 1, %s16
      %p230 = scmp.lt.s32.totalorder %s16, 3
      %p231 = pnand %p229, %p230
      %p232 = pneg %p231
      // Predicated region
      $region9: #{tpu_custom_call.1} parent=5 // pred_check
        _
      $region10: #{tpu_custom_call.1} parent=5 // pred_check_branch
        %234 = sbr.rel (%p231) target = $region12
      $region11: #{tpu_custom_call.1} parent=5 // pred_region
        %s235 = ssub.s32 %s16, 1
        // Predicated region
        $region13: #{tpu_custom_call.1} parent=11 // pred_check
          %p236 = pneg %p80
        $region14: #{tpu_custom_call.1} parent=11 // pred_check_branch
          %238 = sbr.rel (%p236) target = $region16
        $region15: #{tpu_custom_call.1} parent=11 // pred_region
          %p239 = scmp.lt.s32.totalorder %s26, 0
          %s240 = scalar_select %p239, %s26, 0
          %s241 = smul.addr %s240, 4
          %s242 = scalar_lea.vmem %s1, %s241
        $region16: #{tpu_custom_call.1} parent=11 // pred_fallthru
          _
        // Predicated region
        $region17: #{tpu_custom_call.1} parent=11 // pred_check
          %p243 = pneg %p106
        $region18: #{tpu_custom_call.1} parent=11 // pred_check_branch
          %245 = sbr.rel (%p243) target = $region20
        $region19: #{tpu_custom_call.1} parent=11 // pred_region
          %p246 = scmp.lt.s32.totalorder %s26, 0
          %s247 = scalar_select %p246, %s26, 0
          %s248 = scalar_lea.vmem %s2, %s247
        $region20: #{tpu_custom_call.1} parent=11 // pred_fallthru
          _
        // Predicated region
        $region21: #{tpu_custom_call.1} parent=11 // pred_check
          %p249 = pneg %p132
        $region22: #{tpu_custom_call.1} parent=11 // pred_check_branch
          %251 = sbr.rel (%p249) target = $region24
        $region23: #{tpu_custom_call.1} parent=11 // pred_region
          %s252 = smul.u32 16, %s26
          %p253 = scmp.lt.s32.totalorder %s252, 15
          %s254 = scalar_select %p253, %s252, 15
          %s255 = smul.addr %s254, 4
          %s256 = scalar_lea.vmem %s3, %s255
          %s257 = smul.u32 16, %s26
        $region24: #{tpu_custom_call.1} parent=11 // pred_fallthru
          _
        // Predicated region
        $region25: #{tpu_custom_call.1} parent=11 // pred_check
          %p258 = pneg %p153
        $region26: #{tpu_custom_call.1} parent=11 // pred_check_branch
          %260 = sbr.rel (%p258) target = $region28
        $region27: #{tpu_custom_call.1} parent=11 // pred_region
          _
        $region28: #{tpu_custom_call.1} parent=11 // pred_fallthru
          _
        // Predicated region
        $region29: #{tpu_custom_call.1} parent=11 // pred_check
          %p261 = pneg %p174
        $region30: #{tpu_custom_call.1} parent=11 // pred_check_branch
          %263 = sbr.rel (%p261) target = $region32
        $region31: #{tpu_custom_call.1} parent=11 // pred_region
          _
        $region32: #{tpu_custom_call.1} parent=11 // pred_fallthru
          _
        // Predicated region
        $region33: #{tpu_custom_call.1} parent=11 // pred_check
          %p264 = pneg %p195
        $region34: #{tpu_custom_call.1} parent=11 // pred_check_branch
          %266 = sbr.rel (%p264) target = $region36
        $region35: #{tpu_custom_call.1} parent=11 // pred_region
          _
        $region36: #{tpu_custom_call.1} parent=11 // pred_fallthru
          _
      $region12: #{tpu_custom_call.1} parent=5 // pred_fallthru
        _
      %p267 = scmp.lt.s32.totalorder %s16, 2
      // Predicated region
      $region37: #{tpu_custom_call.1} parent=5 // pred_check
        %p268 = pneg %p267
      $region38: #{tpu_custom_call.1} parent=5 // pred_check_branch
        %270 = sbr.rel (%p268) target = $region40
      $region39: #{tpu_custom_call.1} parent=5 // pred_region
        // Predicated region
        $region41: #{tpu_custom_call.1} parent=39 // pred_check
          %p271 = pneg %p48
        $region42: #{tpu_custom_call.1} parent=39 // pred_check_branch
          %273 = sbr.rel (%p271) target = $region44
        $region43: #{tpu_custom_call.1} parent=39 // pred_region
          %p274 = scmp.lt.s32.totalorder %s23, 1
          %s275 = scalar_select %p274, %s23, 1
          %s276 = smul.addr %s275, 8
          %s277 = scalar_lea.vmem %s0, %s276
        $region44: #{tpu_custom_call.1} parent=39 // pred_fallthru
          _
      $region40: #{tpu_custom_call.1} parent=5 // pred_fallthru
        _
      %p278 = scmp.le.s32.totalorder 1, %s16
      %p279 = scmp.lt.s32.totalorder %s16, 3
      %p280 = pnand %p278, %p279
      %p281 = pneg %p280
      // Predicated region
      $region45: #{tpu_custom_call.1} parent=5 // pred_check
        _
      $region46: #{tpu_custom_call.1} parent=5 // pred_check_branch
        %283 = sbr.rel (%p280) target = $region48
      $region47: #{tpu_custom_call.1} parent=5 // pred_region
        %s284 = ssub.s32 %s16, 1
        %p285 = scmp.lt.s32.totalorder %s25, 1
        %s286 = scalar_select %p285, %s25, 1
        %s287 = smul.addr %s286, 8
        %s288 = scalar_lea.vmem %s0, %s287
        %p289 = pneg %p54
        %p290 = pneg %p51
        %p291 = scmp.lt.s32.totalorder %s26, 0
        %s292 = scalar_select %p291, %s26, 0
        %s293 = smul.addr %s292, 4
        %s294 = scalar_lea.vmem %s1, %s293
        %p295 = pneg %p80
        %p296 = pneg %p77
        %p297 = scmp.lt.s32.totalorder %s26, 0
        %s298 = scalar_select %p297, %s26, 0
        %s299 = scalar_lea.vmem %s2, %s298
        %p300 = pneg %p106
        %p301 = pneg %p103
        %s302 = smul.u32 16, %s26
        %p303 = scmp.lt.s32.totalorder %s302, 15
        %s304 = scalar_select %p303, %s302, 15
        %s305 = smul.addr %s304, 4
        %s306 = scalar_lea.vmem %s3, %s305
        %p307 = pneg %p132
        %p308 = pneg %p129
        %p309 = pneg %p153
        %p310 = pneg %p150
        %p311 = pneg %p174
        %p312 = pneg %p171
        %p313 = pneg %p195
        %p314 = pneg %p192
        %p315 = pneg %p221
        %p316 = pneg %p218
        %s317 = sand.u32 %s208, 1
        %s318 = scalar_lea.sflag [#allocation4], %s317
        %s319 = sand.u32 %s208, 1
        %s320 = smul.addr %s319, 8
        %s321 = scalar_lea.vmem [#allocation3], %s320
        %p322 = scmp.lt.s32.totalorder %s25, 1
        %s323 = scalar_select %p322, %s25, 1
        %s324 = smul.addr %s323, 8
        %s325 = scalar_lea.vmem %s0, %s324
        %p326 = scmp.lt.s32.totalorder %s26, 0
        %s327 = scalar_select %p326, %s26, 0
        %s328 = smul.addr %s327, 4
        %s329 = scalar_lea.vmem %s1, %s328
        %p330 = scmp.lt.s32.totalorder %s26, 0
        %s331 = scalar_select %p330, %s26, 0
        %s332 = scalar_lea.vmem %s2, %s331
        %s333 = smul.u32 16, %s26
        %p334 = scmp.lt.s32.totalorder %s333, 15
        %s335 = scalar_select %p334, %s333, 15
        %s336 = smul.addr %s335, 4
        %s337 = scalar_lea.vmem %s3, %s336
        %s338 = smul.u32 16, %s26
        %p340 = scmp.eq.s32.totalorder %s26, 0
        // Predicated region
        $region49: #{tpu_custom_call.1} parent=47 // pred_check
          %p341 = pneg %p340
        $region50: #{tpu_custom_call.1} parent=47 // pred_check_branch
          %343 = sbr.rel (%p341) target = $region52
        $region51: #{tpu_custom_call.1} parent=47 // pred_region
          %vm344 = vcmask 261120
          %345 = vst.msk [vmem:[#allocation2] sm:$0xff] %vm344, 0.0
        $region52: #{tpu_custom_call.1} parent=47 // pred_fallthru
          _
        %v346 = vld [vmem:[%s325] sm:$0xff]
        %v347 = vpack.c.bf16 %v346, %v346
        %v348 = vld [vmem:[%s329] sm:$0xf]
        %v349 = vld [vmem:[%s329 + $0x4] sm:$0xf]
        %v350 = vld [vmem:[%s329 + $0x8] sm:$0xf]
        %v351 = vld [vmem:[%s329 + $0xc] sm:$0xf]
        %v356 = vunpack.c.l.b16 %v348
        %v357 = vunpack.c.l.b16 %v349
        %v358 = vunpack.c.l.b16 %v350
        %v359 = vunpack.c.l.b16 %v351
        %v360 = vpack.c.b16 %v357, %v356
        %v361 = vpack.c.b16 %v359, %v358
        %vm364 = vcmask 261120
        %v366 = vsel %vm364, %v347, 0
        %368 = vmatprep.subr.bf16.mxu0 0
        %369 = vmatpush1.bf16.msra.mxu0 0
        %370 = vmatprep.subr.bf16.mxu0 0
        %371 = vmatpush1.bf16.msra.mxu0 0
        %372 = vmatprep.subr.bf16.mxu0 0
        %373 = vmatpush1.bf16.msra.mxu0 0
        %374 = vmatprep.subr.bf16.mxu0 0
        %375 = vmatpush1.bf16.msra.mxu0 0
        %376 = vmatprep.subr.bf16.mxu0 0
        %377 = vmatpush1.bf16.msra.mxu0 0
        %378 = vmatprep.subr.bf16.mxu0 0
        %379 = vmatpush1.bf16.msra.mxu0 0
        %380 = vmatprep.subr.bf16.mxu0 0
        %381 = vmatpush1.bf16.msra.mxu0 %v361
        %382 = vmatprep.subr.bf16.mxu0 0
        %383 = vmatpush1.bf16.msra.mxu0 %v360
        %384 = vmatprep.subr.bf16.mxu0 0
        %385 = vmatpush2.bf16.msra.mxu0 0
        %386 = vmatprep.subr.bf16.mxu0 0
        %387 = vmatpush2.bf16.msra.mxu0 0
        %388 = vmatprep.subr.bf16.mxu0 0
        %389 = vmatpush2.bf16.msra.mxu0 0
        %390 = vmatprep.subr.bf16.mxu0 0
        %391 = vmatpush2.bf16.msra.mxu0 0
        %392 = vmatprep.subr.bf16.mxu0 0
        %393 = vmatpush2.bf16.msra.mxu0 0
        %394 = vmatprep.subr.bf16.mxu0 0
        %395 = vmatpush2.bf16.msra.mxu0 0
        %396 = vmatprep.subr.bf16.mxu0 0
        %397 = vmatpush2.bf16.msra.mxu0 0
        %398 = vmatprep.subr.bf16.mxu0 0
        %399 = vmatpush2.bf16.msra.mxu0 0
        %400 = vmatprep.mubr.bf16.mxu0 0
        %401 = vmatmul.mubr.bf16.gmra.mxu0 %v366
        %v402 = vpop.f32.mrf.mxu0
        %v403 = vadd.f32 0.0, %v402
        %v404 = vpop.f32.mrf.mxu0
        %v405 = vpop.f32.mrf.mxu0
        %v406 = vpop.f32.mrf.mxu0
        %407 = vdwg.mxu0
        %v408 = vpack.c.bf16 %v403, %v403
        %v409 = vld [vmem:[%s332] sm:$0x1]
        %v410 = vpack.c.bf16 %v409, %v409
        %v412 = vpack.i.b16 %v410, %v410
        %v414 = vlaneseq
        %v415 = vshrl.u32 %v414, 7
        %v416 = vsub.s32 0, %v415
        %v417 = vrot.slane %v412, %v416
        %v418 = vadd.bf16 %v408, %v417
        %v419 = vmax.bf16 %v418, 0
        %v420 = vld [vmem:[#allocation2] sm:$0xff]
        %v421 = vld [vmem:[%s337] sm:$0xf]
        %v422 = vld [vmem:[%s337 + $0x4] sm:$0xf]
        %v423 = vld [vmem:[%s337 + $0x8] sm:$0xf]
        %v424 = vld [vmem:[%s337 + $0xc] sm:$0xf]
        %v425 = vld [vmem:[%s337 + $0x10] sm:$0xf]
        %v426 = vld [vmem:[%s337 + $0x14] sm:$0xf]
        %v427 = vld [vmem:[%s337 + $0x18] sm:$0xf]
        %v428 = vld [vmem:[%s337 + $0x1c] sm:$0xf]
        %v429 = vld [vmem:[%s337 + $0x20] sm:$0xf]
        %v430 = vld [vmem:[%s337 + $0x24] sm:$0xf]
        %v431 = vld [vmem:[%s337 + $0x28] sm:$0xf]
        %v432 = vld [vmem:[%s337 + $0x2c] sm:$0xf]
        %v433 = vld [vmem:[%s337 + $0x30] sm:$0xf]
        %v434 = vld [vmem:[%s337 + $0x34] sm:$0xf]
        %v435 = vld [vmem:[%s337 + $0x38] sm:$0xf]
        %v436 = vld [vmem:[%s337 + $0x3c] sm:$0xf]
        %v453 = vunpack.c.l.b16 %v421
        %v454 = vunpack.c.l.b16 %v422
        %v455 = vunpack.c.l.b16 %v423
        %v456 = vunpack.c.l.b16 %v424
        %v457 = vunpack.c.l.b16 %v425
        %v458 = vunpack.c.l.b16 %v426
        %v459 = vunpack.c.l.b16 %v427
        %v460 = vunpack.c.l.b16 %v428
        %v461 = vunpack.c.l.b16 %v429
        %v462 = vunpack.c.l.b16 %v430
        %v463 = vunpack.c.l.b16 %v431
        %v464 = vunpack.c.l.b16 %v432
        %v465 = vunpack.c.l.b16 %v433
        %v466 = vunpack.c.l.b16 %v434
        %v467 = vunpack.c.l.b16 %v435
        %v468 = vunpack.c.l.b16 %v436
        %v469 = vpack.c.b16 %v454, %v453
        %v470 = vpack.c.b16 %v456, %v455
        %v471 = vpack.c.b16 %v458, %v457
        %v472 = vpack.c.b16 %v460, %v459
        %v473 = vpack.c.b16 %v462, %v461
        %v474 = vpack.c.b16 %v464, %v463
        %v475 = vpack.c.b16 %v466, %v465
        %v476 = vpack.c.b16 %v468, %v467
        %485 = vmatprep.subr.bf16.mxu0 0
        %486 = vmatpush1.bf16.msra.mxu0 %v476
        %487 = vmatprep.subr.bf16.mxu0 0
        %488 = vmatpush1.bf16.msra.mxu0 %v475
        %489 = vmatprep.subr.bf16.mxu0 0
        %490 = vmatpush1.bf16.msra.mxu0 %v474
        %491 = vmatprep.subr.bf16.mxu0 0
        %492 = vmatpush1.bf16.msra.mxu0 %v473
        %493 = vmatprep.subr.bf16.mxu0 0
        %494 = vmatpush1.bf16.msra.mxu0 %v472
        %495 = vmatprep.subr.bf16.mxu0 0
        %496 = vmatpush1.bf16.msra.mxu0 %v471
        %497 = vmatprep.subr.bf16.mxu0 0
        %498 = vmatpush1.bf16.msra.mxu0 %v470
        %499 = vmatprep.subr.bf16.mxu0 0
        %500 = vmatpush1.bf16.msra.mxu0 %v469
        %501 = vmatprep.subr.bf16.mxu0 0
        %502 = vmatpush2.bf16.msra.mxu0 0
        %503 = vmatprep.subr.bf16.mxu0 0
        %504 = vmatpush2.bf16.msra.mxu0 0
        %505 = vmatprep.subr.bf16.mxu0 0
        %506 = vmatpush2.bf16.msra.mxu0 0
        %507 = vmatprep.subr.bf16.mxu0 0
        %508 = vmatpush2.bf16.msra.mxu0 0
        %509 = vmatprep.subr.bf16.mxu0 0
        %510 = vmatpush2.bf16.msra.mxu0 0
        %511 = vmatprep.subr.bf16.mxu0 0
        %512 = vmatpush2.bf16.msra.mxu0 0
        %513 = vmatprep.subr.bf16.mxu0 0
        %514 = vmatpush2.bf16.msra.mxu0 0
        %515 = vmatprep.subr.bf16.mxu0 0
        %516 = vmatpush2.bf16.msra.mxu0 0
        %517 = vmatprep.mubr.bf16.mxu0 0
        %518 = vmatmul.mubr.bf16.gmra.mxu0 %v419
        %v519 = vpop.f32.mrf.mxu0
        %v520 = vadd.f32 0.0, %v519
        %v521 = vpop.f32.mrf.mxu0
        %v522 = vpop.f32.mrf.mxu0
        %v523 = vpop.f32.mrf.mxu0
        %524 = vdwg.mxu0
        %v525 = vadd.f32 %v420, %v520
        %526 = vst.msk [vmem:[#allocation2] sm:$0xff] %vm364, %v525
        // Predicated region
        $region53: #{tpu_custom_call.1} parent=47 // pred_check
          %p527 = pneg %p340
        $region54: #{tpu_custom_call.1} parent=47 // pred_check_branch
          %529 = sbr.rel (%p527) target = $region56
        $region55: #{tpu_custom_call.1} parent=47 // pred_region
          %v530 = vld [vmem:[#allocation2] sm:$0xff]
          %v531 = vld [vmem:[%s4] sm:$0x1]
          %v533 = vlaneseq
          %v534 = vshrl.u32 %v533, 7
          %v535 = vsub.s32 0, %v534
          %v536 = vrot.slane %v531, %v535
          %v538 = vadd.f32 %v530, %v536
          %v539 = vld [vmem:[%s325] sm:$0xff]
          %v540 = vadd.f32 %v538, %v539
          %v541 = vsel %vm364, %v540, 0.0
          %542 = vadd.xlane.f32.xlu0 %v541
          %v543 = vpop.xlane.xlu0 %542
          %v544 = vrcp.pop 32.0
          %v545 = vmul.f32 %v543, %v544
          %v546 = vsub.f32 %v540, %v545
          %v547 = vmul.f32 %v546, %v546
          %v548 = vsel %vm364, %v547, 0.0
          %549 = vadd.xlane.f32.xlu0 %v548
          %v550 = vpop.xlane.xlu0 %549
          %v551 = vmul.f32 %v550, %v544
          %v552 = vadd.f32 %v551, 1e-05
          %v553 = vrsqrt.pop %v552
          %v554 = vmul.f32 %v546, %v553
          %v555 = vld [vmem:[%s5] sm:$0x1]
          %v557 = vlaneseq
          %v558 = vshrl.u32 %v557, 7
          %v559 = vsub.s32 0, %v558
          %v560 = vrot.slane %v555, %v559
          %v562 = vmul.f32 %v554, %v560
          %v563 = vld [vmem:[%s6] sm:$0x1]
          %v565 = vlaneseq
          %v566 = vshrl.u32 %v565, 7
          %v567 = vsub.s32 0, %v566
          %v568 = vrot.slane %v563, %v567
          %v570 = vadd.f32 %v562, %v568
          %571 = vst.msk [vmem:[%s321] sm:$0xff] %vm364, %v570
        $region56: #{tpu_custom_call.1} parent=47 // pred_fallthru
          _
        %s572 = sand.u32 %s208, 1
        %s573 = scalar_lea.sflag [#allocation4], %s572
        %s574 = sand.u32 %s208, 1
        %s575 = smul.addr %s574, 8
        %s576 = scalar_lea.vmem [#allocation3], %s575
        // Predicated region
        $region57: #{tpu_custom_call.1} parent=47 // pred_check
          %p577 = pneg %p218
        $region58: #{tpu_custom_call.1} parent=47 // pred_check_branch
          %579 = sbr.rel (%p577) target = $region60
        $region59: #{tpu_custom_call.1} parent=47 // pred_region
          %s581 = ssub.s32 128, 128
          %582 = vsyncadd %s573, %s581
          %s583 = smul.addr %s25, 128
          %s584 = scalar_lea.hbm %s7, %s583
          %s586 = sshll.u32 %s576, 4
          %s587 = int_to_ptr.vmem [resolvable:$true] %s586
          %589 = dma.vmem_to_hbm [thread:$0]  %s587, 128, %s584, %s573
        $region60: #{tpu_custom_call.1} parent=47 // pred_fallthru
          _
      $region48: #{tpu_custom_call.1} parent=5 // pred_fallthru
        _
      %p590 = scmp.le.s32.totalorder 2, %s16
      // Predicated region
      $region61: #{tpu_custom_call.1} parent=5 // pred_check
        %p591 = pneg %p590
      $region62: #{tpu_custom_call.1} parent=5 // pred_check_branch
        %593 = sbr.rel (%p591) target = $region64
      $region63: #{tpu_custom_call.1} parent=5 // pred_region
        %s594 = ssub.s32 %s16, 2
        // Predicated region
        $region65: #{tpu_custom_call.1} parent=63 // pred_check
          %p595 = pneg %p224
        $region66: #{tpu_custom_call.1} parent=63 // pred_check_branch
          %597 = sbr.rel (%p595) target = $region68
        $region67: #{tpu_custom_call.1} parent=63 // pred_region
          %s598 = sand.u32 %s209, 1
          %s599 = scalar_lea.sflag [#allocation4], %s598
          %s600 = sand.u32 %s209, 1
          %s601 = smul.addr %s600, 8
          %s602 = scalar_lea.vmem [#allocation3], %s601
          %603 = dma.done %s599, 128
        $region68: #{tpu_custom_call.1} parent=63 // pred_fallthru
          _
      $region64: #{tpu_custom_call.1} parent=5 // pred_fallthru
        _
    $region6: #{tpu_custom_call.1} parent=1 // loop_footer
      %s20 = sadd.s32 1, %s16
    $region7: #{tpu_custom_call.1} parent=1 // loop_footer_branch
      %15 = sbr.rel target = $region3
    $region8: #{tpu_custom_call.1} parent=1 // loop_exit
      _
    %604 = vsyncpa [#allocation4], 1
    %s605 = scalar_lea.sflag [#allocation4], 1
    %606 = vsyncpa %s605, 1

</llo_original>
